<compile_context>
chip_gen: v6e
topology: v6e:2x2x1
jax: 0.10.0
libtpu: 0.0.40
codegen_flags: <defaults>
</compile_context>

<pallas_src>
import functools

import jax
import jax.numpy as jnp
from jax.experimental import pallas as pl
from jax.experimental.pallas import tpu as pltpu


_MEGACORE_SPLIT_BYTES = 1 << 20          # force >=2 blocks above this size
_DEFAULT_TILE_BYTES = 6 * 1024 * 1024    # per-block VMEM budget (input side)
_DEFAULT_SMALL_INPUT_BYTES = 256 * 1024  # below this: pure-jnp fallback


def _min_sublane(dtype) -> int:
    itemsize = jnp.dtype(dtype).itemsize
    return {4: 8, 2: 16, 1: 32}.get(itemsize, 8)


def _compute_dtype(dtype):
    dtype = jnp.dtype(dtype)
    if dtype in (jnp.dtype(jnp.bfloat16), jnp.dtype(jnp.float16)):
        return dtype
    return jnp.dtype(jnp.float32)


def _bias_layer_kernel(params_ref, x_ref, o_ref, *, use_bias: bool,
                       compute_dtype):
    # params_ref lives in SMEM: params_ref[0] = alpha + 1, params_ref[1] = beta
    scale = params_ref[0].astype(compute_dtype)
    y = x_ref[...].astype(compute_dtype) * scale
    if use_bias:
        y = y + params_ref[1].astype(compute_dtype)
    o_ref[...] = y.astype(o_ref.dtype)


def _choose_2d_view(x, max_tile_bytes):
    """Return a lane-dense (M, N) view of x, or None if none is available.

    Lane-dense: last dim is a multiple of 128 and a full row (times the dtype
    sublane minimum) fits inside the tile budget, so every block is a
    full-width, unmasked slab and huge last dims are never left untiled.
    """
    itemsize = jnp.dtype(x.dtype).itemsize
    sub = _min_sublane(x.dtype)
    total = x.size
    if total == 0:
        return None
    row_cap_elems = max(128, ((max_tile_bytes // (sub * itemsize)) // 128) * 128)

    # (a) natural trailing axis is already lane-dense and fits the budget
    if x.ndim >= 2:
        n = x.shape[-1]
        if n % 128 == 0 and n <= row_cap_elems:
            return x.reshape(-1, n)

    # (b) elementwise op: a contiguous flat reshape to (-1, K*128) is free
    if total % 128 == 0:
        max_k = min(total // 128, row_cap_elems // 128)
        for k in range(max_k, 0, -1):
            if total % (128 * k) == 0:
                return x.reshape(-1, 128 * k)

    return None


def bias_layer_forward(x, alpha, beta, bias=True, *,
                       max_tile_bytes: int = _DEFAULT_TILE_BYTES,
                       small_input_bytes: int = _DEFAULT_SMALL_INPUT_BYTES,
                       donate_x: bool = False):
    """BiasLayer forward: (alpha + 1) * x (+ beta if bias). Output dtype = x.dtype."""
    x = jnp.asarray(x)
    orig_shape = x.shape
    itemsize = jnp.dtype(x.dtype).itemsize
    total_bytes = x.size * itemsize
    cd = _compute_dtype(x.dtype)

    scale = jnp.asarray(alpha, jnp.float32).reshape(()) + jnp.float32(1.0)
    beta_s = jnp.asarray(beta, jnp.float32).reshape(())

    x2 = None
    if total_bytes >= small_input_bytes:
        x2 = _choose_2d_view(x, max_tile_bytes)

    if x2 is None:
        # Tiny inputs / shapes with no clean lane-dense tiling: fused XLA path.
        y = x.astype(cd) * scale.astype(cd)
        if bias:
            y = y + beta_s.astype(cd)
        return y.astype(x.dtype)

    M, N = x2.shape
    sub = _min_sublane(x2.dtype)
    row_bytes = N * itemsize

    # Tile only M against the VMEM budget (row cap guarantees >= sub rows fit).
    tm = max(sub, ((max_tile_bytes // row_bytes) // sub) * sub)
    if tm >= M:
        tm = M
        # Whole array fits in one tile: still split into >=2 "parallel" blocks
        # for big inputs so both v7x TensorCores contribute HBM bandwidth.
        if total_bytes >= _MEGACORE_SPLIT_BYTES and M >= 2 * sub:
            half = ((pl.cdiv(M, 2) + sub - 1) // sub) * sub
            if half < M:
                tm = half
    grid_m = pl.cdiv(M, tm)

    tile_bytes = tm * row_bytes
    # ~4x tile (in+out, double-buffered) + slack, capped below v7x's 64 MiB.
    vmem_limit = int(min(48 << 20, max(32 << 20, 4 * tile_bytes + (8 << 20))))

    params = jnp.stack([scale, beta_s])  # folded "+1" lives in SMEM

    kernel = functools.partial(_bias_layer_kernel, use_bias=bool(bias),
                               compute_dtype=cd)

    out = pl.pallas_call(
        kernel,
        out_shape=jax.ShapeDtypeStruct((M, N), x2.dtype),
        grid=(grid_m,),
        in_specs=[
            pl.BlockSpec(memory_space=pltpu.SMEM),        # params (2,) in SMEM
            pl.BlockSpec((tm, N), lambda i: (i, 0)),      # lane-dense row slab
        ],
        out_specs=pl.BlockSpec((tm, N), lambda i: (i, 0)),
        compiler_params=pltpu.CompilerParams(
            dimension_semantics=("parallel",),            # megacore-shardable
            vmem_limit_bytes=vmem_limit),
        input_output_aliases=({1: 0} if donate_x else {}),
    )(params, x2)

    return out.reshape(orig_shape)


if __name__ == "__main__":
    key = jax.random.PRNGKey(0)
    keys = jax.random.split(key, 8)

    # Deterministic parameter init matching the module: torch.zeros(1) both.
    alpha0 = jnp.zeros((1,), jnp.float32)
    beta0 = jnp.zeros((1,), jnp.float32)
    alpha = jnp.asarray(0.5, jnp.float32)
    beta = jnp.asarray(-0.25, jnp.float32)

    def ref(xv, a, b, use_bias=True):
        a = jnp.asarray(a, jnp.float32).reshape(())
        b = jnp.asarray(b, jnp.float32).reshape(())
        y = (a + 1.0) * xv.astype(jnp.float32)
        if use_bias:
            y = y + b
        return y.astype(xv.dtype)

    # 1) Primary example: (2, 4, 16, 16) -> flat lane-dense reshape path.
    x_main = jax.random.normal(keys[0], (2, 4, 16, 16), dtype=jnp.float32)
    out_main = bias_layer_forward(x_main, alpha, beta, bias=True,
                                  small_input_bytes=0)
    jax.block_until_ready(out_main)
    assert out_main.shape == x_main.shape
    assert jnp.allclose(out_main, ref(x_main, alpha, beta, True), atol=1e-6), \
        "flat-reshape path mismatch"

    # alpha = beta = 0  =>  identity (through the Pallas path).
    out_id = bias_layer_forward(x_main, alpha0, beta0, bias=True,
                                small_input_bytes=0)
    jax.block_until_ready(out_id)
    assert jnp.allclose(out_id, x_main, atol=1e-6), "identity case mismatch"

    # 2) Natural lane-dense logits view, bias=False (Pallas path).
    x_logits = jax.random.normal(keys[1], (16, 256), dtype=jnp.float32)
    out_nb = bias_layer_forward(x_logits, alpha, beta, bias=False,
                                small_input_bytes=0)
    assert jnp.allclose(out_nb, ref(x_logits, alpha, beta, False),
                        atol=1e-6), "bias=False mismatch"

    # 3) Tiny input -> pure-jnp fallback (default threshold).
    out_tiny = bias_layer_forward(x_logits, alpha, beta, bias=True)
    assert jnp.allclose(out_tiny, ref(x_logits, alpha, beta, True),
                        atol=1e-6), "tiny-input fallback mismatch"

    # 4) Multi-block tiled path (tm=8 -> grid of 8) and ragged trailing block.
    x_tall = jax.random.normal(keys[2], (64, 256), dtype=jnp.float32)
    out_tiled = bias_layer_forward(x_tall, alpha, beta, bias=True,
                                   small_input_bytes=0,
                                   max_tile_bytes=8 * 256 * 4)
    assert jnp.allclose(out_tiled, ref(x_tall, alpha, beta, True),
                        atol=1e-6), "tiled path mismatch"

    x_odd = jax.random.normal(keys[3], (20, 256), dtype=jnp.float32)
    out_odd = bias_layer_forward(x_odd, alpha, beta, bias=True,
                                 small_input_bytes=0,
                                 max_tile_bytes=8 * 256 * 4)
    assert jnp.allclose(out_odd, ref(x_odd, alpha, beta, True),
                        atol=1e-6), "ragged-M mismatch"

    # 5) Megacore split: fits one tile but is force-split into 2 parallel blocks.
    x_mid = jax.random.normal(keys[4], (384, 1024), dtype=jnp.float32)
    out_mid = bias_layer_forward(x_mid, alpha, beta, bias=True)
    jax.block_until_ready(out_mid)
    assert jnp.allclose(out_mid, ref(x_mid, alpha, beta, True),
                        atol=1e-6), "megacore-split mismatch"

    # 6) bfloat16 input: in-dtype compute, dtype-aware sublane minimum.
    x_bf16 = jax.random.normal(keys[5], (32, 256), dtype=jnp.bfloat16)
    out_bf16 = bias_layer_forward(x_bf16, alpha, beta, bias=True,
                                  small_input_bytes=0)
    assert jnp.allclose(out_bf16.astype(jnp.float32),
                        ref(x_bf16, alpha, beta, True).astype(jnp.float32),
                        atol=2e-2), "bf16 mismatch"

    # 7) Shape with no lane-dense tiling (total not a multiple of 128) -> jnp.
    x_irr = jax.random.normal(keys[6], (10, 100), dtype=jnp.float32)
    out_irr = bias_layer_forward(x_irr, alpha, beta, bias=True,
                                 small_input_bytes=0)
    assert jnp.allclose(out_irr, ref(x_irr, alpha, beta, True),
                        atol=1e-6), "irregular-shape fallback mismatch"

    print("KERNEL_OK")
</pallas_src>

<mosaic_0001>
module attributes {stable_mosaic.version = 11 : i64} {
  func.func @_bias_layer_kernel(%arg0: i32, %arg1: memref<2xf32, #tpu.memory_space<smem>>, %arg2: memref<1x2048xf32, #tpu.memory_space<vmem>>, %arg3: memref<1x2048xf32, #tpu.memory_space<vmem>>) attributes {dimension_semantics = [#tpu.dimension_semantics<parallel>], iteration_bounds = array<i64: 1>, scalar_prefetch = 0 : i64, scratch_operands = 0 : i64, tpu.core_type = #tpu.core_type<tc>, window_params = [{transform_indices = @transform_0, window_bounds = array<i64: 2>}, {transform_indices = @transform_1, window_bounds = array<i64: 1, 2048>}, {transform_indices = @transform_2, window_bounds = array<i64: 1, 2048>}]} {
    %c0 = arith.constant 0 : index
    %0 = memref.load %arg1[%c0] : memref<2xf32, #tpu.memory_space<smem>>
    %c0_0 = arith.constant 0 : index
    %c0_1 = arith.constant 0 : index
    %1 = vector.load %arg2[%c0_0, %c0_1] : memref<1x2048xf32, #tpu.memory_space<vmem>>, vector<1x2048xf32>
    %2 = vector.broadcast %0 : f32 to vector<1x2048xf32>
    %3 = arith.mulf %1, %2 : vector<1x2048xf32>
    %c1 = arith.constant 1 : index
    %4 = memref.load %arg1[%c1] : memref<2xf32, #tpu.memory_space<smem>>
    %5 = vector.broadcast %4 : f32 to vector<1x2048xf32>
    %6 = arith.addf %3, %5 : vector<1x2048xf32>
    %c0_2 = arith.constant 0 : index
    %c0_3 = arith.constant 0 : index
    %7 = vector.load %arg3[%c0_2, %c0_3] : memref<1x2048xf32, #tpu.memory_space<vmem>>, vector<1x2048xf32>
    tpu.vector_store %arg3[%c0_2, %c0_3], %6 {strides = array<i32>} : memref<1x2048xf32, #tpu.memory_space<vmem>>, vector<1x2048xf32>,
    return
  }
  func.func @transform_0(%arg0: i32) -> i32 {
    %c0_i32 = arith.constant 0 : i32
    %c0_i32_0 = arith.constant 0 : i32
    return %c0_i32 : i32
  }
  func.func @transform_1(%arg0: i32) -> (i32, i32) {
    %c0_i32 = arith.constant 0 : i32
    %c0_i32_0 = arith.constant 0 : i32
    return %arg0, %c0_i32 : i32, i32
  }
  func.func @transform_2(%arg0: i32) -> (i32, i32) {
    %c0_i32 = arith.constant 0 : i32
    %c0_i32_0 = arith.constant 0 : i32
    return %arg0, %c0_i32 : i32, i32
  }
}

</mosaic_0001>

<llo_original>
// kernel: tpu_custom_call.1
$region0: #{tpu_custom_call.1}
  #allocation0 [shape = 'u32[]', space=smem, size = 0x4, offset = 0x4, fixed_abs, tag = 'smem constant byte address 0x4 - core index']
  #allocation1 [shape = 'u32[144,128]{1,0:T(1,128)}', space=vmem, size = 0x12000, scoped, tag = 'internal scratch']
  %s0 = inlined_call_operand.hbm [shape: f32[2], index: 0, kind: input, shape index: {}]
  %s1 = inlined_call_operand.hbm [shape: f32[1,2048], index: 1, kind: input, shape index: {}]
  %s2 = inlined_call_operand.hbm [shape: f32[1,2048], index: 2, kind: output, shape index: {}]
  %s3 = sld [smem:[#allocation0]]
  $region26: #{tpu_custom_call.1} parent=0
    _
  %s5 = ssub.s32 1, %s3
  %s6 = scalar_select 0, %s5, %s3
  $region1: #{tpu_custom_call.1} parent=0
    #allocation2 [shape = 'u8[512]{0}', space=smem, size = 0x200, scoped, tag = 'input window, operand 0, single buffered']
    #allocation3 [shape = 's32[1]{0}', space=sflag, size = 0x4, scoped, tag = 'scoped memory for tpu_custom_call.1']
    #allocation4 [shape = 's32[1]{0}', space=sflag, size = 0x4, scoped, tag = 'scoped memory for tpu_custom_call.1']
    #allocation5 [shape = 's32[1]{0}', space=sflag, size = 0x4, scoped, tag = 'scoped memory for tpu_custom_call.1']
    #allocation6 [shape = 'u8[8192]{0}', space=vmem, size = 0x2000, scoped, tag = 'input window, operand 1, single buffered']
    #allocation7 [shape = 'u8[8192]{0}', space=vmem, size = 0x2000, scoped, tag = 'output window, operand 0, single buffered']
    %7 = vsyncpa [#allocation5], 0
    %8 = vsyncpa [#allocation3], 0
    %9 = vsyncpa [#allocation4], 0
    // Predicated region
    $region2: #{tpu_custom_call.1} parent=1 // pred_check
      _
    $region3: #{tpu_custom_call.1} parent=1 // pred_check_branch
      %11 = sbr.rel (0) target = $region5
    $region4: #{tpu_custom_call.1} parent=1 // pred_region
      %s13 = ssub.s32 16, 16
      %14 = vsyncadd [#allocation5], %s13
      %17 = dma.hbm_to_smem %s0, 16, [#allocation2], [#allocation5]
    $region5: #{tpu_custom_call.1} parent=1 // pred_fallthru
      _
    // Predicated region
    $region6: #{tpu_custom_call.1} parent=1 // pred_check
      _
    $region7: #{tpu_custom_call.1} parent=1 // pred_check_branch
      %19 = sbr.rel (0) target = $region9
    $region8: #{tpu_custom_call.1} parent=1 // pred_region
      %s21 = ssub.s32 256, 256
      %22 = vsyncadd [#allocation3], %s21
      %s24 = sshll.u32 [#allocation6], 4
      %s25 = int_to_ptr.vmem [resolvable:$true] %s24
      %27 = dma.hbm_to_vmem [thread:$0]  %s1, 256, %s25, [#allocation3]
    $region9: #{tpu_custom_call.1} parent=1 // pred_fallthru
      _
    // Predicated region
    $region10: #{tpu_custom_call.1} parent=1 // pred_check
      _
    $region11: #{tpu_custom_call.1} parent=1 // pred_check_branch
      %29 = sbr.rel (0) target = $region13
    $region12: #{tpu_custom_call.1} parent=1 // pred_region
      %30 = dma.done [#allocation5], 16
    $region13: #{tpu_custom_call.1} parent=1 // pred_fallthru
      _
    // Predicated region
    $region14: #{tpu_custom_call.1} parent=1 // pred_check
      _
    $region15: #{tpu_custom_call.1} parent=1 // pred_check_branch
      %32 = sbr.rel (0) target = $region17
    $region16: #{tpu_custom_call.1} parent=1 // pred_region
      %33 = dma.done [#allocation3], 256
    $region17: #{tpu_custom_call.1} parent=1 // pred_fallthru
      _
    %34 = sfence
    %s35 = sld [smem:[#allocation2]]
    %v36 = vld [vmem:[#allocation6] sm:$0xff]
    %v37 = vld [vmem:[#allocation6 + $0x8] sm:$0xff]
    %v38 = vstv %s35
    %v39 = vmul.f32 %v36, %v38
    %v40 = vmul.f32 %v37, %v38
    %s41 = sld [smem:[#allocation2 + $0x1]]
    %v42 = vstv %s41
    %v43 = vadd.f32 %v39, %v42
    %v44 = vadd.f32 %v40, %v42
    %45 = vst [vmem:[#allocation7] sm:$0xff] %v43
    %46 = vst [vmem:[#allocation7 + $0x8] sm:$0xff] %v44
    // Predicated region
    $region18: #{tpu_custom_call.1} parent=1 // pred_check
      _
    $region19: #{tpu_custom_call.1} parent=1 // pred_check_branch
      %48 = sbr.rel (0) target = $region21
    $region20: #{tpu_custom_call.1} parent=1 // pred_region
      %s50 = ssub.s32 256, 256
      %51 = vsyncadd [#allocation4], %s50
      %s53 = sshll.u32 [#allocation7], 4
      %s54 = int_to_ptr.vmem [resolvable:$true] %s53
      %56 = dma.vmem_to_hbm [thread:$0]  %s54, 256, %s2, [#allocation4]
    $region21: #{tpu_custom_call.1} parent=1 // pred_fallthru
      _
    // Predicated region
    $region22: #{tpu_custom_call.1} parent=1 // pred_check
      _
    $region23: #{tpu_custom_call.1} parent=1 // pred_check_branch
      %58 = sbr.rel (0) target = $region25
    $region24: #{tpu_custom_call.1} parent=1 // pred_region
      %59 = dma.done [#allocation4], 256
    $region25: #{tpu_custom_call.1} parent=1 // pred_fallthru
      _
    %60 = vsyncpa [#allocation3], 1
    %61 = vsyncpa [#allocation4], 1
    %62 = vsyncpa [#allocation5], 1

</llo_original>
